<compile_context>
chip_gen: v6e
topology: v6e:2x2x1
jax: 0.10.0
libtpu: 0.0.40
codegen_flags: <defaults>
</compile_context>

<pallas_src>
import math

import jax
import jax.numpy as jnp
from jax.experimental import pallas as pl
from jax.experimental.pallas import tpu as pltpu


def _round_up(x, m):
    return ((x + m - 1) // m) * m


def _qk_isp_kernel(x_ref, wk_ref, bk_ref, wq_ref, bq_ref, k_ref, q_ref, xn_ref):
    # x_ref:  [TM, D]   input row tile
    # wk_ref: [D, TN]   stacked K-head weight column tile (gamma folded in)
    # bk_ref: [1, TN]   stacked K-head bias column tile (beta folded in)
    # wq_ref: [D, D]    Q weight (gamma folded in), resident
    # bq_ref: [1, D]    Q bias (beta folded in), resident
    # k_ref:  [TM, TN]  K output tile
    # q_ref:  [TM, D]   Q output tile (written once per row tile)
    # xn_ref: [TM, D]   VMEM scratch: normalized + matmul-dtype-cast activations
    j = pl.program_id(1)

    @pl.when(j == 0)
    def _():
        # Two-pass LayerNorm statistics in f32 (torch default eps = 1e-5).
        x = x_ref[...].astype(jnp.float32)
        mean = jnp.mean(x, axis=-1, keepdims=True)
        cen = x - mean
        var = jnp.mean(cen * cen, axis=-1, keepdims=True)
        xn = cen * jax.lax.rsqrt(var + 1e-5)
        # gamma/beta were folded into the weights/biases at prep time.
        xn_ref[...] = xn.astype(xn_ref.dtype)
        # Q projection: once per row tile.
        q = jnp.dot(xn_ref[...], wq_ref[...], preferred_element_type=jnp.float32)
        q_ref[...] = (q + bq_ref[...]).astype(q_ref.dtype)

    # K projection for this column tile (MXU, f32 accumulation).
    k = jnp.dot(xn_ref[...], wk_ref[...], preferred_element_type=jnp.float32)
    k_ref[...] = (k + bk_ref[...]).astype(k_ref.dtype)


def prepare_qk_isp_params(gamma, beta, W_k, b_k, W_q, b_q,
                          matmul_dtype=jnp.bfloat16):
    """One-time parameter preparation (hoisted out of the forward path).

    Stacks the N K-head weights into one [D, N*D] slab, folds the LayerNorm
    affine (gamma/beta) into the projection weights/biases in f32, then casts
    the weight slabs to the MXU operand dtype (bf16 by default).
    W_k[i] / W_q are in "x @ W" orientation ([D_in, D_out]).
    """
    N, D, _ = W_k.shape
    gamma = jnp.asarray(gamma, jnp.float32).reshape(D)
    beta = jnp.asarray(beta, jnp.float32).reshape(D)

    Wk_big = jnp.concatenate([jnp.asarray(W_k[i], jnp.float32) for i in range(N)],
                             axis=1)                                   # [D, N*D]
    bk_big = jnp.concatenate([jnp.asarray(b_k[i], jnp.float32) for i in range(N)],
                             axis=0)                                   # [N*D]
    Wq_f32 = jnp.asarray(W_q, jnp.float32)
    bq_f32 = jnp.asarray(b_q, jnp.float32)

    # Fold LN affine:  (xhat*gamma + beta) @ W + b == xhat @ (diag(gamma)@W) + (beta@W + b)
    Wk_fold = gamma[:, None] * Wk_big
    bk_fold = beta @ Wk_big + bk_big
    Wq_fold = gamma[:, None] * Wq_f32
    bq_fold = beta @ Wq_f32 + bq_f32

    return dict(
        W_k=Wk_fold.astype(matmul_dtype),                 # [D, N*D]
        b_k=bk_fold.reshape(1, N * D).astype(jnp.float32),
        W_q=Wq_fold.astype(matmul_dtype),                 # [D, D]
        b_q=bq_fold.reshape(1, D).astype(jnp.float32),
        num_heads=N,
        dim=D,
        matmul_dtype=matmul_dtype,
    )


def _vmem_capacity_bytes():
    try:
        info = pltpu.get_tpu_info()
        cap = int(getattr(info, "vmem_capacity_bytes", 0))
        if cap > 0:
            return cap
    except Exception:
        pass
    return 64 << 20  # conservative default (v7x per-TensorCore VMEM)


def qk_isp_generator_apply(E_isp, params, out_dtype=None):
    """Fused LayerNorm + (N K-heads, Q) projection.

    Returns (Q_isp [B, W, 1, D], K_isp [B, W, N, D]) — same order as the
    PyTorch forward's `return (Q_isp, K_isp)`.
    """
    B, Wn, D = E_isp.shape
    assert D == params["dim"]
    N = params["num_heads"]
    NK = N * D
    out_dtype = jnp.dtype(out_dtype or E_isp.dtype)
    mm_dtype = jnp.dtype(params["matmul_dtype"])
    w_bytes = mm_dtype.itemsize
    x_bytes = jnp.dtype(E_isp.dtype).itemsize
    o_bytes = out_dtype.itemsize

    M = B * Wn
    x = E_isp.reshape(M, D)

    # ---- Hardware-derived VMEM budgets (v7x: 64 MiB, v5e/v6e: 128 MiB). -----
    vmem_cap = _vmem_capacity_bytes()
    budget = int(0.60 * vmem_cap)          # working-set budget with headroom

    # ---- K-slab column tiling: only split if the resident slab is too big. --
    wk_budget = budget // 2
    tn = NK
    nk_pad = NK
    if D * NK * w_bytes > wk_budget:
        tn = max(128, (wk_budget // (D * w_bytes)) // 128 * 128)
        nk_pad = _round_up(NK, tn)
    grid_cols = nk_pad // tn

    W_k_big, b_k_big = params["W_k"], params["b_k"]
    if nk_pad != NK:
        W_k_big = jnp.pad(W_k_big, ((0, 0), (0, nk_pad - NK)))
        b_k_big = jnp.pad(b_k_big, ((0, 0), (0, nk_pad - NK)))

    # ---- Row tiling: largest tile fitting the budget; no jnp.pad of x. ------
    # Round to the sublane pack of the output dtype (8 f32 / 16 bf16 / 32 int8).
    sublane = max(8, 32 // max(1, o_bytes))
    m_cap = _round_up(M, sublane)
    wk_bufs = 1 if grid_cols == 1 else 2
    fixed = (wk_bufs * D * tn * w_bytes            # K weight tile(s)
             + D * D * w_bytes                     # W_q (single-buffered)
             + 2 * 8 * (tn + D) * 4)               # biases (sublane-padded)
    per_row = (2 * D * x_bytes                     # x double-buffer
               + D * w_bytes                       # x_norm scratch
               + 2 * tn * o_bytes                  # K out double-buffer
               + 2 * D * o_bytes                   # Q out double-buffer
               + (2 * D + tn) * 4)                 # in-kernel f32 temporaries
    tm = sublane
    for cand in (4096, 2048, 1024, 512, 256, 128, 64, 32, 16, 8):
        t = min(_round_up(cand, sublane), m_cap)
        t = max(t, sublane)
        if fixed + t * per_row <= budget:
            tm = t
            break
    grid_rows = pl.cdiv(M, tm)

    vmem_need = fixed + tm * per_row
    vmem_limit = int(min(int(0.85 * vmem_cap), max(32 << 20, 2 * vmem_need)))
    vmem_limit = max(vmem_limit, vmem_need + (4 << 20))
    vmem_limit = int(min(vmem_limit, int(0.9 * vmem_cap)))

    cost = pl.CostEstimate(
        flops=2 * M * D * (NK + D) + 8 * M * D,
        transcendentals=M,
        bytes_accessed=(M * D * x_bytes
                        + D * nk_pad * w_bytes * (grid_rows if grid_cols > 1 else 1)
                        + D * D * w_bytes
                        + M * (nk_pad + D) * o_bytes),
    )

    wq, bq = params["W_q"], params["b_q"]
    k_slab_const = (grid_cols == 1)

    def build(use_single_buffer):
        def spec(shape, idx, const_index):
            if use_single_buffer and const_index:
                return pl.BlockSpec(shape, idx, pipeline_mode=pl.Buffered(1))
            return pl.BlockSpec(shape, idx)

        in_specs = [
            pl.BlockSpec((tm, D), lambda i, j: (i, 0)),      # x row tile
            spec((D, tn), lambda i, j: (0, j), k_slab_const),  # K weight tile
            spec((1, tn), lambda i, j: (0, j), k_slab_const),  # K bias tile
            spec((D, D), lambda i, j: (0, 0), True),           # W_q (resident)
            spec((1, D), lambda i, j: (0, 0), True),           # b_q (resident)
        ]
        out_specs = (
            pl.BlockSpec((tm, tn), lambda i, j: (i, j)),     # K output
            pl.BlockSpec((tm, D), lambda i, j: (i, 0)),      # Q output
        )
        return pl.pallas_call(
            _qk_isp_kernel,
            out_shape=(jax.ShapeDtypeStruct((M, nk_pad), out_dtype),
                       jax.ShapeDtypeStruct((M, D), out_dtype)),
            grid=(grid_rows, grid_cols),
            in_specs=in_specs,
            out_specs=out_specs,
            scratch_shapes=[pltpu.VMEM((tm, D), mm_dtype)],  # normalized-x cache
            compiler_params=pltpu.CompilerParams(
                dimension_semantics=("parallel", "arbitrary"),
                vmem_limit_bytes=vmem_limit,
            ),
            cost_estimate=cost,
        )

    try:
        k_flat, q_flat = build(True)(x, W_k_big, b_k_big, wq, bq)
    except Exception:
        # Fallback if single-buffering via pipeline_mode is unsupported here.
        k_flat, q_flat = build(False)(x, W_k_big, b_k_big, wq, bq)

    if nk_pad != NK:
        k_flat = k_flat[:, :NK]
    K_isp = k_flat.reshape(B, Wn, N, D)
    Q_isp = q_flat.reshape(B, Wn, 1, D)
    return Q_isp, K_isp


def qk_isp_generator(E_isp, gamma, beta, W_k, b_k, W_q, b_q,
                     matmul_dtype=jnp.bfloat16, out_dtype=None):
    """Convenience wrapper (prep + apply). In production, call
    prepare_qk_isp_params once and reuse the prepared params."""
    params = prepare_qk_isp_params(gamma, beta, W_k, b_k, W_q, b_q, matmul_dtype)
    return qk_isp_generator_apply(E_isp, params, out_dtype=out_dtype)


def _xavier_uniform(key, d):
    # nn.Linear(dim, dim) xavier_uniform_: bound = sqrt(6 / (fan_in + fan_out))
    bound = math.sqrt(6.0 / (d + d))
    return jax.random.uniform(key, (d, d), jnp.float32, -bound, bound)


if __name__ == "__main__":
    # Small shapes consistent with the module: [batches, windows, dim].
    B, Wn, D, N = 2, 8, 32, 4

    key = jax.random.PRNGKey(0)
    keys = jax.random.split(key, N + 2)

    E_isp = jax.random.normal(keys[0], (B, Wn, D), jnp.float32)

    # xavier-uniform weights, zero biases, LayerNorm gamma=1 / beta=0
    # (matches _initialize_weights semantics). Weights in x @ W orientation.
    W_k = jnp.stack([_xavier_uniform(keys[1 + i], D) for i in range(N)], axis=0)
    b_k = jnp.zeros((N, D), jnp.float32)
    W_q = _xavier_uniform(keys[1 + N], D)
    b_q = jnp.zeros((D,), jnp.float32)
    gamma = jnp.ones((D,), jnp.float32)
    beta = jnp.zeros((D,), jnp.float32)

    # One-time param prep (stack + LN-fold + bf16 cast), then run the kernel.
    params = prepare_qk_isp_params(gamma, beta, W_k, b_k, W_q, b_q)
    Q_isp, K_isp = qk_isp_generator_apply(E_isp, params)
    jax.block_until_ready((Q_isp, K_isp))
    assert Q_isp.shape == (B, Wn, 1, D) and K_isp.shape == (B, Wn, N, D)

    # ---- Reference 1: pure f32 semantics (loose tol: kernel uses bf16 MXU ops).
    mean = jnp.mean(E_isp, axis=-1, keepdims=True)
    var = jnp.mean((E_isp - mean) ** 2, axis=-1, keepdims=True)
    xn = (E_isp - mean) * jax.lax.rsqrt(var + 1e-5) * gamma + beta
    K_ref = jnp.stack([xn @ W_k[i] + b_k[i] for i in range(N)], axis=2)
    Q_ref = (xn @ W_q + b_q)[:, :, None, :]
    assert jnp.allclose(Q_isp, Q_ref, atol=3e-2, rtol=3e-2)
    assert jnp.allclose(K_isp, K_ref, atol=3e-2, rtol=3e-2)

    # ---- Reference 2: matched precision (two-pass LN in f32, bf16 operands,
    # f32 accumulation) — tight check of the stacking / folding / output logic.
    xn_c = xn.reshape(-1, D).astype(jnp.bfloat16)
    K_ref_bf = jnp.stack(
        [jnp.dot(xn_c, W_k[i].astype(jnp.bfloat16),
                 preferred_element_type=jnp.float32).reshape(B, Wn, D) + b_k[i]
         for i in range(N)], axis=2)
    Q_ref_bf = (jnp.dot(xn_c, W_q.astype(jnp.bfloat16),
                        preferred_element_type=jnp.float32
                        ).reshape(B, Wn, D) + b_q)[:, :, None, :]
    assert jnp.allclose(Q_isp, Q_ref_bf, atol=5e-3, rtol=5e-3)
    assert jnp.allclose(K_isp, K_ref_bf, atol=5e-3, rtol=5e-3)

    print("KERNEL_OK")
</pallas_src>

<mosaic_0001>
module attributes {stable_mosaic.version = 11 : i64} {
  func.func @_qk_isp_kernel(%arg0: i32, %arg1: i32, %arg2: memref<16x32xf32, #tpu.memory_space<vmem>>, %arg3: memref<32x128xbf16, #tpu.memory_space<vmem>>, %arg4: memref<1x128xf32, #tpu.memory_space<vmem>>, %arg5: memref<32x32xbf16, #tpu.memory_space<vmem>>, %arg6: memref<1x32xf32, #tpu.memory_space<vmem>>, %arg7: memref<16x128xf32, #tpu.memory_space<vmem>>, %arg8: memref<16x32xf32, #tpu.memory_space<vmem>>, %arg9: memref<16x32xbf16, #tpu.memory_space<vmem>>) attributes {dimension_semantics = [#tpu.dimension_semantics<parallel>, #tpu.dimension_semantics<arbitrary>], iteration_bounds = array<i64: 1, 1>, scalar_prefetch = 0 : i64, scratch_operands = 1 : i64, tpu.core_type = #tpu.core_type<tc>, window_params = [{transform_indices = @transform_0, window_bounds = array<i64: 16, 32>}, {pipeline_mode = #tpu.pipeline_mode<synchronous>, transform_indices = @transform_1, window_bounds = array<i64: 32, 128>}, {pipeline_mode = #tpu.pipeline_mode<synchronous>, transform_indices = @transform_2, window_bounds = array<i64: 1, 128>}, {pipeline_mode = #tpu.pipeline_mode<synchronous>, transform_indices = @transform_3, window_bounds = array<i64: 32, 32>}, {pipeline_mode = #tpu.pipeline_mode<synchronous>, transform_indices = @transform_4, window_bounds = array<i64: 1, 32>}, {transform_indices = @transform_5, window_bounds = array<i64: 16, 128>}, {transform_indices = @transform_6, window_bounds = array<i64: 16, 32>}]} {
    %c0_i32 = arith.constant 0 : i32
    %0 = arith.cmpi eq, %arg1, %c0_i32 : i32
    %1 = arith.extui %0 : i1 to i32
    %c0_i32_0 = arith.constant 0 : i32
    %2 = arith.cmpi ne, %1, %c0_i32_0 : i32
    scf.if %2 {
      %c0_8 = arith.constant 0 : index
      %c0_9 = arith.constant 0 : index
      %10 = vector.load %arg2[%c0_8, %c0_9] : memref<16x32xf32, #tpu.memory_space<vmem>>, vector<16x32xf32>
      %cst_10 = arith.constant dense<0.000000e+00> : vector<16xf32>
      %11 = vector.multi_reduction <add>, %10, %cst_10 [1] : vector<16x32xf32> to vector<16xf32>
      %12 = vector.shape_cast %11 : vector<16xf32> to vector<16x1xf32>
      %cst_11 = arith.constant 3.200000e+01 : f32
      %13 = vector.broadcast %cst_11 : f32 to vector<16x1xf32>
      %14 = arith.divf %12, %13 : vector<16x1xf32>
      %15 = vector.broadcast %14 : vector<16x1xf32> to vector<16x32xf32>
      %16 = arith.subf %10, %15 : vector<16x32xf32>
      %17 = arith.mulf %16, %16 : vector<16x32xf32>
      %cst_12 = arith.constant dense<0.000000e+00> : vector<16xf32>
      %18 = vector.multi_reduction <add>, %17, %cst_12 [1] : vector<16x32xf32> to vector<16xf32>
      %19 = vector.shape_cast %18 : vector<16xf32> to vector<16x1xf32>
      %cst_13 = arith.constant 3.200000e+01 : f32
      %20 = vector.broadcast %cst_13 : f32 to vector<16x1xf32>
      %21 = arith.divf %19, %20 : vector<16x1xf32>
      %cst_14 = arith.constant 9.99999974E-6 : f32
      %22 = vector.broadcast %cst_14 : f32 to vector<16x1xf32>
      %23 = arith.addf %21, %22 : vector<16x1xf32>
      %24 = math.rsqrt %23 : vector<16x1xf32>
      %25 = vector.broadcast %24 : vector<16x1xf32> to vector<16x32xf32>
      %26 = arith.mulf %16, %25 : vector<16x32xf32>
      %27 = arith.truncf %26 : vector<16x32xf32> to vector<16x32xbf16>
      %c0_15 = arith.constant 0 : index
      %c0_16 = arith.constant 0 : index
      %28 = vector.load %arg9[%c0_15, %c0_16] : memref<16x32xbf16, #tpu.memory_space<vmem>>, vector<16x32xbf16>
      tpu.vector_store %arg9[%c0_15, %c0_16], %27 {strides = array<i32>} : memref<16x32xbf16, #tpu.memory_space<vmem>>, vector<16x32xbf16>,
      %c0_17 = arith.constant 0 : index
      %c0_18 = arith.constant 0 : index
      %29 = vector.load %arg9[%c0_17, %c0_18] : memref<16x32xbf16, #tpu.memory_space<vmem>>, vector<16x32xbf16>
      %c0_19 = arith.constant 0 : index
      %c0_20 = arith.constant 0 : index
      %30 = vector.load %arg5[%c0_19, %c0_20] : memref<32x32xbf16, #tpu.memory_space<vmem>>, vector<32x32xbf16>
      %cst_21 = arith.constant dense<0.000000e+00> : vector<16x32xf32>
      %31 = tpu.matmul %29, %30, %cst_21 {dimension_numbers = #tpu.dot_dimension_numbers<[1], [0], [0], [1], [0, 0, 1, 1], [], []>} : vector<16x32xbf16>, vector<32x32xbf16>, vector<16x32xf32> -> vector<16x32xf32>
      %c0_22 = arith.constant 0 : index
      %c0_23 = arith.constant 0 : index
      %32 = vector.load %arg6[%c0_22, %c0_23] : memref<1x32xf32, #tpu.memory_space<vmem>>, vector<1x32xf32>
      %33 = vector.broadcast %32 : vector<1x32xf32> to vector<16x32xf32>
      %34 = arith.addf %31, %33 : vector<16x32xf32>
      %c0_24 = arith.constant 0 : index
      %c0_25 = arith.constant 0 : index
      %35 = vector.load %arg8[%c0_24, %c0_25] : memref<16x32xf32, #tpu.memory_space<vmem>>, vector<16x32xf32>
      tpu.vector_store %arg8[%c0_24, %c0_25], %34 {strides = array<i32>} : memref<16x32xf32, #tpu.memory_space<vmem>>, vector<16x32xf32>,
    } else {
    }
    %c0 = arith.constant 0 : index
    %c0_1 = arith.constant 0 : index
    %3 = vector.load %arg9[%c0, %c0_1] : memref<16x32xbf16, #tpu.memory_space<vmem>>, vector<16x32xbf16>
    %c0_2 = arith.constant 0 : index
    %c0_3 = arith.constant 0 : index
    %4 = vector.load %arg3[%c0_2, %c0_3] : memref<32x128xbf16, #tpu.memory_space<vmem>>, vector<32x128xbf16>
    %cst = arith.constant dense<0.000000e+00> : vector<16x128xf32>
    %5 = tpu.matmul %3, %4, %cst {dimension_numbers = #tpu.dot_dimension_numbers<[1], [0], [0], [1], [0, 0, 1, 1], [], []>} : vector<16x32xbf16>, vector<32x128xbf16>, vector<16x128xf32> -> vector<16x128xf32>
    %c0_4 = arith.constant 0 : index
    %c0_5 = arith.constant 0 : index
    %6 = vector.load %arg4[%c0_4, %c0_5] : memref<1x128xf32, #tpu.memory_space<vmem>>, vector<1x128xf32>
    %7 = vector.broadcast %6 : vector<1x128xf32> to vector<16x128xf32>
    %8 = arith.addf %5, %7 : vector<16x128xf32>
    %c0_6 = arith.constant 0 : index
    %c0_7 = arith.constant 0 : index
    %9 = vector.load %arg7[%c0_6, %c0_7] : memref<16x128xf32, #tpu.memory_space<vmem>>, vector<16x128xf32>
    tpu.vector_store %arg7[%c0_6, %c0_7], %8 {strides = array<i32>} : memref<16x128xf32, #tpu.memory_space<vmem>>, vector<16x128xf32>,
    return
  }
  func.func @transform_0(%arg0: i32, %arg1: i32) -> (i32, i32) {
    %c0_i32 = arith.constant 0 : i32
    %c0_i32_0 = arith.constant 0 : i32
    return %arg0, %c0_i32 : i32, i32
  }
  func.func @transform_1(%arg0: i32, %arg1: i32) -> (i32, i32) {
    %c0_i32 = arith.constant 0 : i32
    %c0_i32_0 = arith.constant 0 : i32
    return %c0_i32, %arg1 : i32, i32
  }
  func.func @transform_2(%arg0: i32, %arg1: i32) -> (i32, i32) {
    %c0_i32 = arith.constant 0 : i32
    %c0_i32_0 = arith.constant 0 : i32
    return %c0_i32, %arg1 : i32, i32
  }
  func.func @transform_3(%arg0: i32, %arg1: i32) -> (i32, i32) {
    %c0_i32 = arith.constant 0 : i32
    %c0_i32_0 = arith.constant 0 : i32
    %c0_i32_1 = arith.constant 0 : i32
    return %c0_i32, %c0_i32_0 : i32, i32
  }
  func.func @transform_4(%arg0: i32, %arg1: i32) -> (i32, i32) {
    %c0_i32 = arith.constant 0 : i32
    %c0_i32_0 = arith.constant 0 : i32
    %c0_i32_1 = arith.constant 0 : i32
    return %c0_i32, %c0_i32_0 : i32, i32
  }
  func.func @transform_5(%arg0: i32, %arg1: i32) -> (i32, i32) {
    %c0_i32 = arith.constant 0 : i32
    return %arg0, %arg1 : i32, i32
  }
  func.func @transform_6(%arg0: i32, %arg1: i32) -> (i32, i32) {
    %c0_i32 = arith.constant 0 : i32
    %c0_i32_0 = arith.constant 0 : i32
    return %arg0, %c0_i32 : i32, i32
  }
}

module attributes {stable_mosaic.version = 11 : i64} {
  func.func @_qk_isp_kernel(%arg0: i32, %arg1: i32, %arg2: memref<16x32xf32, #tpu.memory_space<vmem>>, %arg3: memref<32x128xbf16, #tpu.memory_space<vmem>>, %arg4: memref<1x128xf32, #tpu.memory_space<vmem>>, %arg5: memref<32x32xbf16, #tpu.memory_space<vmem>>, %arg6: memref<1x32xf32, #tpu.memory_space<vmem>>, %arg7: memref<16x128xf32, #tpu.memory_space<vmem>>, %arg8: memref<16x32xf32, #tpu.memory_space<vmem>>, %arg9: memref<16x32xbf16, #tpu.memory_space<vmem>>) attributes {dimension_semantics = [#tpu.dimension_semantics<parallel>, #tpu.dimension_semantics<arbitrary>], iteration_bounds = array<i64: 1, 1>, scalar_prefetch = 0 : i64, scratch_operands = 1 : i64, tpu.core_type = #tpu.core_type<tc>, window_params = [{transform_indices = @transform_0, window_bounds = array<i64: 16, 32>}, {transform_indices = @transform_1, window_bounds = array<i64: 32, 128>}, {transform_indices = @transform_2, window_bounds = array<i64: 1, 128>}, {pipeline_mode = #tpu.pipeline_mode<synchronous>, transform_indices = @transform_3, window_bounds = array<i64: 32, 32>}, {pipeline_mode = #tpu.pipeline_mode<synchronous>, transform_indices = @transform_4, window_bounds = array<i64: 1, 32>}, {transform_indices = @transform_5, window_bounds = array<i64: 16, 128>}, {transform_indices = @transform_6, window_bounds = array<i64: 16, 32>}]} {
    %c0_i32 = arith.constant 0 : i32
    %0 = arith.cmpi eq, %arg1, %c0_i32 : i32
    %1 = arith.extui %0 : i1 to i32
    %c0_i32_0 = arith.constant 0 : i32
    %2 = arith.cmpi ne, %1, %c0_i32_0 : i32
    scf.if %2 {
      %c0_8 = arith.constant 0 : index
      %c0_9 = arith.constant 0 : index
      %10 = vector.load %arg2[%c0_8, %c0_9] : memref<16x32xf32, #tpu.memory_space<vmem>>, vector<16x32xf32>
      %cst_10 = arith.constant dense<0.000000e+00> : vector<16xf32>
      %11 = vector.multi_reduction <add>, %10, %cst_10 [1] : vector<16x32xf32> to vector<16xf32>
      %12 = vector.shape_cast %11 : vector<16xf32> to vector<16x1xf32>
      %cst_11 = arith.constant 3.200000e+01 : f32
      %13 = vector.broadcast %cst_11 : f32 to vector<16x1xf32>
      %14 = arith.divf %12, %13 : vector<16x1xf32>
      %15 = vector.broadcast %14 : vector<16x1xf32> to vector<16x32xf32>
      %16 = arith.subf %10, %15 : vector<16x32xf32>
      %17 = arith.mulf %16, %16 : vector<16x32xf32>
      %cst_12 = arith.constant dense<0.000000e+00> : vector<16xf32>
      %18 = vector.multi_reduction <add>, %17, %cst_12 [1] : vector<16x32xf32> to vector<16xf32>
      %19 = vector.shape_cast %18 : vector<16xf32> to vector<16x1xf32>
      %cst_13 = arith.constant 3.200000e+01 : f32
      %20 = vector.broadcast %cst_13 : f32 to vector<16x1xf32>
      %21 = arith.divf %19, %20 : vector<16x1xf32>
      %cst_14 = arith.constant 9.99999974E-6 : f32
      %22 = vector.broadcast %cst_14 : f32 to vector<16x1xf32>
      %23 = arith.addf %21, %22 : vector<16x1xf32>
      %24 = math.rsqrt %23 : vector<16x1xf32>
      %25 = vector.broadcast %24 : vector<16x1xf32> to vector<16x32xf32>
      %26 = arith.mulf %16, %25 : vector<16x32xf32>
      %27 = arith.truncf %26 : vector<16x32xf32> to vector<16x32xbf16>
      %c0_15 = arith.constant 0 : index
      %c0_16 = arith.constant 0 : index
      %28 = vector.load %arg9[%c0_15, %c0_16] : memref<16x32xbf16, #tpu.memory_space<vmem>>, vector<16x32xbf16>
      tpu.vector_store %arg9[%c0_15, %c0_16], %27 {strides = array<i32>} : memref<16x32xbf16, #tpu.memory_space<vmem>>, vector<16x32xbf16>,
      %c0_17 = arith.constant 0 : index
      %c0_18 = arith.constant 0 : index
      %29 = vector.load %arg9[%c0_17, %c0_18] : memref<16x32xbf16, #tpu.memory_space<vmem>>, vector<16x32xbf16>
      %c0_19 = arith.constant 0 : index
      %c0_20 = arith.constant 0 : index
      %30 = vector.load %arg5[%c0_19, %c0_20] : memref<32x32xbf16, #tpu.memory_space<vmem>>, vector<32x32xbf16>
      %cst_21 = arith.constant dense<0.000000e+00> : vector<16x32xf32>
      %31 = tpu.matmul %29, %30, %cst_21 {dimension_numbers = #tpu.dot_dimension_numbers<[1], [0], [0], [1], [0, 0, 1, 1], [], []>} : vector<16x32xbf16>, vector<32x32xbf16>, vector<16x32xf32> -> vector<16x32xf32>
      %c0_22 = arith.constant 0 : index
      %c0_23 = arith.constant 0 : index
      %32 = vector.load %arg6[%c0_22, %c0_23] : memref<1x32xf32, #tpu.memory_space<vmem>>, vector<1x32xf32>
      %33 = vector.broadcast %32 : vector<1x32xf32> to vector<16x32xf32>
      %34 = arith.addf %31, %33 : vector<16x32xf32>
      %c0_24 = arith.constant 0 : index
      %c0_25 = arith.constant 0 : index
      %35 = vector.load %arg8[%c0_24, %c0_25] : memref<16x32xf32, #tpu.memory_space<vmem>>, vector<16x32xf32>
      tpu.vector_store %arg8[%c0_24, %c0_25], %34 {strides = array<i32>} : memref<16x32xf32, #tpu.memory_space<vmem>>, vector<16x32xf32>,
    } else {
    }
    %c0 = arith.constant 0 : index
    %c0_1 = arith.constant 0 : index
    %3 = vector.load %arg9[%c0, %c0_1] : memref<16x32xbf16, #tpu.memory_space<vmem>>, vector<16x32xbf16>
    %c0_2 = arith.constant 0 : index
    %c0_3 = arith.constant 0 : index
    %4 = vector.load %arg3[%c0_2, %c0_3] : memref<32x128xbf16, #tpu.memory_space<vmem>>, vector<32x128xbf16>
    %cst = arith.constant dense<0.000000e+00> : vector<16x128xf32>
    %5 = tpu.matmul %3, %4, %cst {dimension_numbers = #tpu.dot_dimension_numbers<[1], [0], [0], [1], [0, 0, 1, 1], [], []>} : vector<16x32xbf16>, vector<32x128xbf16>, vector<16x128xf32> -> vector<16x128xf32>
    %c0_4 = arith.constant 0 : index
    %c0_5 = arith.constant 0 : index
    %6 = vector.load %arg4[%c0_4, %c0_5] : memref<1x128xf32, #tpu.memory_space<vmem>>, vector<1x128xf32>
    %7 = vector.broadcast %6 : vector<1x128xf32> to vector<16x128xf32>
    %8 = arith.addf %5, %7 : vector<16x128xf32>
    %c0_6 = arith.constant 0 : index
    %c0_7 = arith.constant 0 : index
    %9 = vector.load %arg7[%c0_6, %c0_7] : memref<16x128xf32, #tpu.memory_space<vmem>>, vector<16x128xf32>
    tpu.vector_store %arg7[%c0_6, %c0_7], %8 {strides = array<i32>} : memref<16x128xf32, #tpu.memory_space<vmem>>, vector<16x128xf32>,
    return
  }
  func.func @transform_0(%arg0: i32, %arg1: i32) -> (i32, i32) {
    %c0_i32 = arith.constant 0 : i32
    %c0_i32_0 = arith.constant 0 : i32
    return %arg0, %c0_i32 : i32, i32
  }
  func.func @transform_1(%arg0: i32, %arg1: i32) -> (i32, i32) {
    %c0_i32 = arith.constant 0 : i32
    %c0_i32_0 = arith.constant 0 : i32
    return %c0_i32, %arg1 : i32, i32
  }
  func.func @transform_2(%arg0: i32, %arg1: i32) -> (i32, i32) {
    %c0_i32 = arith.constant 0 : i32
    %c0_i32_0 = arith.constant 0 : i32
    return %c0_i32, %arg1 : i32, i32
  }
  func.func @transform_3(%arg0: i32, %arg1: i32) -> (i32, i32) {
    %c0_i32 = arith.constant 0 : i32
    %c0_i32_0 = arith.constant 0 : i32
    %c0_i32_1 = arith.constant 0 : i32
    return %c0_i32, %c0_i32_0 : i32, i32
  }
  func.func @transform_4(%arg0: i32, %arg1: i32) -> (i32, i32) {
    %c0_i32 = arith.constant 0 : i32
    %c0_i32_0 = arith.constant 0 : i32
    %c0_i32_1 = arith.constant 0 : i32
    return %c0_i32, %c0_i32_0 : i32, i32
  }
  func.func @transform_5(%arg0: i32, %arg1: i32) -> (i32, i32) {
    %c0_i32 = arith.constant 0 : i32
    return %arg0, %arg1 : i32, i32
  }
  func.func @transform_6(%arg0: i32, %arg1: i32) -> (i32, i32) {
    %c0_i32 = arith.constant 0 : i32
    %c0_i32_0 = arith.constant 0 : i32
    return %arg0, %c0_i32 : i32, i32
  }
}

</mosaic_0001>

<llo_original>
// kernel: tpu_custom_call.1
$region0: #{tpu_custom_call.1}
  #allocation0 [shape = 'u32[]', space=smem, size = 0x4, offset = 0x4, fixed_abs, tag = 'smem constant byte address 0x4 - core index']
  #allocation1 [shape = 'u32[144,128]{1,0:T(1,128)}', space=vmem, size = 0x12000, scoped, tag = 'internal scratch']
  #allocation2 [shape = 'bf16[16,32]{1,0:T(8,128)(2,1)}', space=vmem, size = 0x1000, scoped, tag = 'scratch operand']
  %s0 = inlined_call_operand.hbm [shape: f32[16,32], index: 0, kind: input, shape index: {}]
  %s1 = inlined_call_operand.hbm [shape: bf16[32,128], index: 1, kind: input, shape index: {}]
  %s2 = inlined_call_operand.vmem [shape: f32[1,128], index: 2, kind: input, shape index: {}]
  %s3 = inlined_call_operand.hbm [shape: bf16[32,32], index: 3, kind: input, shape index: {}]
  %s4 = inlined_call_operand.vmem [shape: f32[1,32], index: 4, kind: input, shape index: {}]
  %s5 = inlined_call_operand.hbm [shape: f32[16,128], index: 5, kind: output, shape index: {0}]
  %s6 = inlined_call_operand.hbm [shape: f32[16,32], index: 6, kind: output, shape index: {1}]
  %7 = xla_tuple %s5, %s6
  %s8 = sld [smem:[#allocation0]]
  $region54: #{tpu_custom_call.1} parent=0
    _
  %s10 = ssub.s32 1, %s8
  %s11 = scalar_select 0, %s10, %s8
  $region1: #{tpu_custom_call.1} parent=0
    #allocation3 [shape = 'u8[8192]{0}', space=vmem, size = 0x2000, scoped, tag = 'input window, operand 0, single buffered']
    #allocation4 [shape = 's32[1]{0}', space=sflag, size = 0x4, scoped, tag = 'scoped memory for tpu_custom_call.1']
    #allocation5 [shape = 's32[1]{0}', space=sflag, size = 0x4, scoped, tag = 'scoped memory for tpu_custom_call.1']
    #allocation6 [shape = 'u8[8192]{0}', space=vmem, size = 0x2000, scoped, tag = 'input window, operand 1, single buffered']
    #allocation7 [shape = 's32[1]{0}', space=sflag, size = 0x4, scoped, tag = 'scoped memory for tpu_custom_call.1']
    #allocation8 [shape = 'u8[8192]{0}', space=vmem, size = 0x2000, scoped, tag = 'input window, operand 3, single buffered']
    #allocation9 [shape = 'u8[8192]{0}', space=vmem, size = 0x2000, scoped, tag = 'output window, operand 0, single buffered']
    #allocation10 [shape = 'u8[8192]{0}', space=vmem, size = 0x2000, scoped, tag = 'output window, operand 1, single buffered']
    #allocation11 [shape = 's32[1]{0}', space=sflag, size = 0x4, scoped, tag = 'scoped memory for tpu_custom_call.1']
    %12 = vsyncpa [#allocation4], 0
    %13 = vsyncpa [#allocation7], 0
    %14 = vsyncpa [#allocation5], 0
    %15 = vsyncpa [#allocation11], 0
    // Predicated region
    $region2: #{tpu_custom_call.1} parent=1 // pred_check
      _
    $region3: #{tpu_custom_call.1} parent=1 // pred_check_branch
      %17 = sbr.rel (0) target = $region5
    $region4: #{tpu_custom_call.1} parent=1 // pred_region
      %s19 = ssub.s32 256, 256
      %20 = vsyncadd [#allocation4], %s19
      %s21 = sshll.u32 [#allocation3], 4
      %s22 = int_to_ptr.vmem [resolvable:$true] %s21
      %27 = dma.hbm_to_vmem [thread:$0]  %s0, 256, %s22, [#allocation4], 128, 128, 8
    $region5: #{tpu_custom_call.1} parent=1 // pred_fallthru
      _
    // Predicated region
    $region6: #{tpu_custom_call.1} parent=1 // pred_check
      _
    $region7: #{tpu_custom_call.1} parent=1 // pred_check_branch
      %29 = sbr.rel (0) target = $region9
    $region8: #{tpu_custom_call.1} parent=1 // pred_region
      %s31 = ssub.s32 256, 256
      %32 = vsyncadd [#allocation7], %s31
      %s33 = sshll.u32 [#allocation6], 4
      %s34 = int_to_ptr.vmem [resolvable:$true] %s33
      %39 = dma.hbm_to_vmem [thread:$0]  %s1, 256, %s34, [#allocation7], 64, 64, 4
    $region9: #{tpu_custom_call.1} parent=1 // pred_fallthru
      _
    // Predicated region
    $region10: #{tpu_custom_call.1} parent=1 // pred_check
      _
    $region11: #{tpu_custom_call.1} parent=1 // pred_check_branch
      %41 = sbr.rel (0) target = $region13
    $region12: #{tpu_custom_call.1} parent=1 // pred_region
      _
    $region13: #{tpu_custom_call.1} parent=1 // pred_fallthru
      _
    // Predicated region
    $region14: #{tpu_custom_call.1} parent=1 // pred_check
      _
    $region15: #{tpu_custom_call.1} parent=1 // pred_check_branch
      %43 = sbr.rel (0) target = $region17
    $region16: #{tpu_custom_call.1} parent=1 // pred_region
      %s45 = ssub.s32 256, 256
      %46 = vsyncadd [#allocation7], %s45
      %s47 = sshll.u32 [#allocation8], 4
      %s48 = int_to_ptr.vmem [resolvable:$true] %s47
      %53 = dma.hbm_to_vmem [thread:$0]  %s3, 256, %s48, [#allocation7], 64, 64, 4
    $region17: #{tpu_custom_call.1} parent=1 // pred_fallthru
      _
    // Predicated region
    $region18: #{tpu_custom_call.1} parent=1 // pred_check
      _
    $region19: #{tpu_custom_call.1} parent=1 // pred_check_branch
      %55 = sbr.rel (0) target = $region21
    $region20: #{tpu_custom_call.1} parent=1 // pred_region
      _
    $region21: #{tpu_custom_call.1} parent=1 // pred_fallthru
      _
    // Predicated region
    $region22: #{tpu_custom_call.1} parent=1 // pred_check
      _
    $region23: #{tpu_custom_call.1} parent=1 // pred_check_branch
      %57 = sbr.rel (0) target = $region25
    $region24: #{tpu_custom_call.1} parent=1 // pred_region
      %58 = dma.done [#allocation4], 256
    $region25: #{tpu_custom_call.1} parent=1 // pred_fallthru
      _
    // Predicated region
    $region26: #{tpu_custom_call.1} parent=1 // pred_check
      _
    $region27: #{tpu_custom_call.1} parent=1 // pred_check_branch
      %60 = sbr.rel (0) target = $region29
    $region28: #{tpu_custom_call.1} parent=1 // pred_region
      %61 = dma.done [#allocation7], 256
    $region29: #{tpu_custom_call.1} parent=1 // pred_fallthru
      _
    // Predicated region
    $region30: #{tpu_custom_call.1} parent=1 // pred_check
      _
    $region31: #{tpu_custom_call.1} parent=1 // pred_check_branch
      %63 = sbr.rel (0) target = $region33
    $region32: #{tpu_custom_call.1} parent=1 // pred_region
      %64 = dma.done [#allocation7], 256
    $region33: #{tpu_custom_call.1} parent=1 // pred_fallthru
      _
    %p66 = scmp.eq.s32.totalorder 0, 0
    // Predicated region
    $region34: #{tpu_custom_call.1} parent=1 // pred_check
      %p67 = pneg %p66
    $region35: #{tpu_custom_call.1} parent=1 // pred_check_branch
      %69 = sbr.rel (%p67) target = $region37
    $region36: #{tpu_custom_call.1} parent=1 // pred_region
      %v70 = vld [vmem:[#allocation3] sm:$0xff]
      %v71 = vld [vmem:[#allocation3 + $0x8] sm:$0xff]
      %vm72 = vcmask 261120
      %v73 = vsel %vm72, %v70, 0.0
      %74 = vadd.xlane.f32.xlu0 %v73
      %v75 = vpop.xlane.xlu0 %74
      %v76 = vsel %vm72, %v71, 0.0
      %77 = vadd.xlane.f32.xlu0 %v76
      %v78 = vpop.xlane.xlu0 %77
      %v79 = vrcp.pop 32.0
      %v80 = vmul.f32 %v75, %v79
      %v81 = vmul.f32 %v78, %v79
      %v82 = vsub.f32 %v70, %v80
      %v83 = vsub.f32 %v71, %v81
      %v84 = vmul.f32 %v82, %v82
      %v85 = vmul.f32 %v83, %v83
      %v86 = vsel %vm72, %v84, 0.0
      %87 = vadd.xlane.f32.xlu0 %v86
      %v88 = vpop.xlane.xlu0 %87
      %v89 = vsel %vm72, %v85, 0.0
      %90 = vadd.xlane.f32.xlu0 %v89
      %v91 = vpop.xlane.xlu0 %90
      %v92 = vmul.f32 %v88, %v79
      %v93 = vmul.f32 %v91, %v79
      %v94 = vadd.f32 %v92, 1e-05
      %v95 = vadd.f32 %v93, 1e-05
      %v96 = vrsqrt.pop %v94
      %v97 = vrsqrt.pop %v95
      %v98 = vmul.f32 %v82, %v96
      %v99 = vmul.f32 %v83, %v97
      %v100 = vpack.c.bf16 %v99, %v98
      %v102 = vunpack.c.l.b16 %v100
      %v103 = vunpack.c.h.b16 %v100
      %v104 = vpack.c.b16 %v102, %v102
      %v105 = vpack.c.b16 %v103, %v103
      %vm108 = vcmask 257024
      %109 = vst.msk [vmem:[#allocation2] sm:$0xf] %vm108, %v104
      %110 = vst.msk [vmem:[#allocation2 + $0x4] sm:$0xf] %vm108, %v105
      %v111 = vld [vmem:[#allocation2] sm:$0xf]
      %v112 = vld [vmem:[#allocation2 + $0x4] sm:$0xf]
      %v113 = vld [vmem:[#allocation8] sm:$0xf]
      %v114 = vld [vmem:[#allocation8 + $0x4] sm:$0xf]
      %v115 = vld [vmem:[#allocation8 + $0x8] sm:$0xf]
      %v116 = vld [vmem:[#allocation8 + $0xc] sm:$0xf]
      %v117 = vld [vmem:[%s4] sm:$0x1]
      %v119 = vlaneseq
      %v120 = vshrl.u32 %v119, 7
      %v121 = vsub.s32 0, %v120
      %v122 = vrot.slane %v117, %v121
      %v126 = vunpack.c.l.b16 %v111
      %v127 = vunpack.c.l.b16 %v112
      %v128 = vpack.c.b16 %v127, %v126
      %v133 = vunpack.c.l.b16 %v113
      %v134 = vunpack.c.l.b16 %v114
      %v135 = vunpack.c.l.b16 %v115
      %v136 = vunpack.c.l.b16 %v116
      %v137 = vpack.c.b16 %v134, %v133
      %v138 = vpack.c.b16 %v136, %v135
      %v142 = vsel %vm72, %v128, 0
      %144 = vmatprep.subr.bf16.mxu0 0
      %145 = vmatpush1.bf16.msra.mxu0 0
      %146 = vmatprep.subr.bf16.mxu0 0
      %147 = vmatpush1.bf16.msra.mxu0 0
      %148 = vmatprep.subr.bf16.mxu0 0
      %149 = vmatpush1.bf16.msra.mxu0 0
      %150 = vmatprep.subr.bf16.mxu0 0
      %151 = vmatpush1.bf16.msra.mxu0 0
      %152 = vmatprep.subr.bf16.mxu0 0
      %153 = vmatpush1.bf16.msra.mxu0 0
      %154 = vmatprep.subr.bf16.mxu0 0
      %155 = vmatpush1.bf16.msra.mxu0 0
      %156 = vmatprep.subr.bf16.mxu0 0
      %157 = vmatpush1.bf16.msra.mxu0 %v138
      %158 = vmatprep.subr.bf16.mxu0 0
      %159 = vmatpush1.bf16.msra.mxu0 %v137
      %160 = vmatprep.subr.bf16.mxu0 0
      %161 = vmatpush2.bf16.msra.mxu0 0
      %162 = vmatprep.subr.bf16.mxu0 0
      %163 = vmatpush2.bf16.msra.mxu0 0
      %164 = vmatprep.subr.bf16.mxu0 0
      %165 = vmatpush2.bf16.msra.mxu0 0
      %166 = vmatprep.subr.bf16.mxu0 0
      %167 = vmatpush2.bf16.msra.mxu0 0
      %168 = vmatprep.subr.bf16.mxu0 0
      %169 = vmatpush2.bf16.msra.mxu0 0
      %170 = vmatprep.subr.bf16.mxu0 0
      %171 = vmatpush2.bf16.msra.mxu0 0
      %172 = vmatprep.subr.bf16.mxu0 0
      %173 = vmatpush2.bf16.msra.mxu0 0
      %174 = vmatprep.subr.bf16.mxu0 0
      %175 = vmatpush2.bf16.msra.mxu0 0
      %176 = vmatprep.mubr.bf16.mxu0 0
      %177 = vmatmul.mubr.bf16.gmra.mxu0 %v142
      %v178 = vpop.f32.mrf.mxu0
      %v179 = vadd.f32 %v122, %v178
      %v180 = vpop.f32.mrf.mxu0
      %v181 = vpop.f32.mrf.mxu0
      %v182 = vadd.f32 %v122, %v181
      %v183 = vpop.f32.mrf.mxu0
      %184 = vdwg.mxu0
      %185 = vst.msk [vmem:[#allocation10] sm:$0xff] %vm72, %v179
      %186 = vst.msk [vmem:[#allocation10 + $0x8] sm:$0xff] %vm72, %v182
    $region37: #{tpu_custom_call.1} parent=1 // pred_fallthru
      _
    %v187 = vld [vmem:[#allocation2] sm:$0xf]
    %v188 = vld [vmem:[#allocation2 + $0x4] sm:$0xf]
    %v189 = vld [vmem:[#allocation6] sm:$0xf]
    %v190 = vld [vmem:[#allocation6 + $0x4] sm:$0xf]
    %v191 = vld [vmem:[#allocation6 + $0x8] sm:$0xf]
    %v192 = vld [vmem:[#allocation6 + $0xc] sm:$0xf]
    %v193 = vld [vmem:[%s2] sm:$0x1]
    %v195 = vlaneseq
    %v196 = vshrl.u32 %v195, 7
    %v197 = vsub.s32 0, %v196
    %v198 = vrot.slane %v193, %v197
    %v202 = vunpack.c.l.b16 %v187
    %v203 = vunpack.c.l.b16 %v188
    %v204 = vpack.c.b16 %v203, %v202
    %v209 = vunpack.c.l.b16 %v189
    %v210 = vunpack.c.l.b16 %v190
    %v211 = vunpack.c.l.b16 %v191
    %v212 = vunpack.c.l.b16 %v192
    %v213 = vpack.c.b16 %v210, %v209
    %v214 = vpack.c.b16 %v212, %v211
    %vm217 = vcmask 261120
    %v219 = vsel %vm217, %v204, 0
    %221 = vmatprep.subr.bf16.mxu0 0
    %222 = vmatpush1.bf16.msra.mxu0 0
    %223 = vmatprep.subr.bf16.mxu0 0
    %224 = vmatpush1.bf16.msra.mxu0 0
    %225 = vmatprep.subr.bf16.mxu0 0
    %226 = vmatpush1.bf16.msra.mxu0 0
    %227 = vmatprep.subr.bf16.mxu0 0
    %228 = vmatpush1.bf16.msra.mxu0 0
    %229 = vmatprep.subr.bf16.mxu0 0
    %230 = vmatpush1.bf16.msra.mxu0 0
    %231 = vmatprep.subr.bf16.mxu0 0
    %232 = vmatpush1.bf16.msra.mxu0 0
    %233 = vmatprep.subr.bf16.mxu0 0
    %234 = vmatpush1.bf16.msra.mxu0 %v214
    %235 = vmatprep.subr.bf16.mxu0 0
    %236 = vmatpush1.bf16.msra.mxu0 %v213
    %237 = vmatprep.subr.bf16.mxu0 0
    %238 = vmatpush2.bf16.msra.mxu0 0
    %239 = vmatprep.subr.bf16.mxu0 0
    %240 = vmatpush2.bf16.msra.mxu0 0
    %241 = vmatprep.subr.bf16.mxu0 0
    %242 = vmatpush2.bf16.msra.mxu0 0
    %243 = vmatprep.subr.bf16.mxu0 0
    %244 = vmatpush2.bf16.msra.mxu0 0
    %245 = vmatprep.subr.bf16.mxu0 0
    %246 = vmatpush2.bf16.msra.mxu0 0
    %247 = vmatprep.subr.bf16.mxu0 0
    %248 = vmatpush2.bf16.msra.mxu0 0
    %249 = vmatprep.subr.bf16.mxu0 0
    %250 = vmatpush2.bf16.msra.mxu0 0
    %251 = vmatprep.subr.bf16.mxu0 0
    %252 = vmatpush2.bf16.msra.mxu0 0
    %253 = vmatprep.mubr.bf16.mxu0 0
    %254 = vmatmul.mubr.bf16.gmra.mxu0 %v219
    %v255 = vpop.f32.mrf.mxu0
    %v256 = vadd.f32 %v198, %v255
    %v257 = vpop.f32.mrf.mxu0
    %v258 = vpop.f32.mrf.mxu0
    %v259 = vadd.f32 %v198, %v258
    %v260 = vpop.f32.mrf.mxu0
    %261 = vdwg.mxu0
    %262 = vst [vmem:[#allocation9] sm:$0xff] %v256
    %263 = vst [vmem:[#allocation9 + $0x8] sm:$0xff] %v259
    // Predicated region
    $region38: #{tpu_custom_call.1} parent=1 // pred_check
      _
    $region39: #{tpu_custom_call.1} parent=1 // pred_check_branch
      %265 = sbr.rel (0) target = $region41
    $region40: #{tpu_custom_call.1} parent=1 // pred_region
      %s267 = ssub.s32 256, 256
      %268 = vsyncadd [#allocation5], %s267
      %s269 = sshll.u32 [#allocation9], 4
      %s270 = int_to_ptr.vmem [resolvable:$true] %s269
      %275 = dma.vmem_to_hbm [thread:$0]  %s270, 256, %s5, [#allocation5], 128, 128, 8
    $region41: #{tpu_custom_call.1} parent=1 // pred_fallthru
      _
    // Predicated region
    $region42: #{tpu_custom_call.1} parent=1 // pred_check
      _
    $region43: #{tpu_custom_call.1} parent=1 // pred_check_branch
      %277 = sbr.rel (0) target = $region45
    $region44: #{tpu_custom_call.1} parent=1 // pred_region
      %s279 = ssub.s32 256, 256
      %280 = vsyncadd [#allocation11], %s279
      %s281 = sshll.u32 [#allocation10], 4
      %s282 = int_to_ptr.vmem [resolvable:$true] %s281
      %287 = dma.vmem_to_hbm [thread:$0]  %s282, 256, %s6, [#allocation11], 128, 128, 8
    $region45: #{tpu_custom_call.1} parent=1 // pred_fallthru
      _
    // Predicated region
    $region46: #{tpu_custom_call.1} parent=1 // pred_check
      _
    $region47: #{tpu_custom_call.1} parent=1 // pred_check_branch
      %289 = sbr.rel (0) target = $region49
    $region48: #{tpu_custom_call.1} parent=1 // pred_region
      %290 = dma.done [#allocation5], 256
    $region49: #{tpu_custom_call.1} parent=1 // pred_fallthru
      _
    // Predicated region
    $region50: #{tpu_custom_call.1} parent=1 // pred_check
      _
    $region51: #{tpu_custom_call.1} parent=1 // pred_check_branch
      %292 = sbr.rel (0) target = $region53
    $region52: #{tpu_custom_call.1} parent=1 // pred_region
      %293 = dma.done [#allocation11], 256
    $region53: #{tpu_custom_call.1} parent=1 // pred_fallthru
      _
    %294 = vsyncpa [#allocation4], 1
    %295 = vsyncpa [#allocation7], 1
    %296 = vsyncpa [#allocation5], 1
    %297 = vsyncpa [#allocation11], 1

// kernel: tpu_custom_call.1
$region0: #{tpu_custom_call.1}
  #allocation0 [shape = 'u32[]', space=smem, size = 0x4, offset = 0x4, fixed_abs, tag = 'smem constant byte address 0x4 - core index']
  #allocation1 [shape = 'u32[144,128]{1,0:T(1,128)}', space=vmem, size = 0x12000, scoped, tag = 'internal scratch']
  #allocation2 [shape = 'bf16[16,32]{1,0:T(8,128)(2,1)}', space=vmem, size = 0x1000, scoped, tag = 'scratch operand']
  %s0 = inlined_call_operand.hbm [shape: f32[16,32], index: 0, kind: input, shape index: {}]
  %s1 = inlined_call_operand.hbm [shape: bf16[32,128], index: 1, kind: input, shape index: {}]
  %s2 = inlined_call_operand.vmem [shape: f32[1,128], index: 2, kind: input, shape index: {}]
  %s3 = inlined_call_operand.hbm [shape: bf16[32,32], index: 3, kind: input, shape index: {}]
  %s4 = inlined_call_operand.vmem [shape: f32[1,32], index: 4, kind: input, shape index: {}]
  %s5 = inlined_call_operand.hbm [shape: f32[16,128], index: 5, kind: output, shape index: {0}]
  %s6 = inlined_call_operand.hbm [shape: f32[16,32], index: 6, kind: output, shape index: {1}]
  %7 = xla_tuple %s5, %s6
  %s8 = sld [smem:[#allocation0]]
  $region54: #{tpu_custom_call.1} parent=0
    _
  %s10 = ssub.s32 1, %s8
  %s11 = scalar_select 0, %s10, %s8
  $region1: #{tpu_custom_call.1} parent=0
    #allocation3 [shape = 'u8[8192]{0}', space=vmem, size = 0x2000, scoped, tag = 'input window, operand 0, single buffered']
    #allocation4 [shape = 's32[1]{0}', space=sflag, size = 0x4, scoped, tag = 'scoped memory for tpu_custom_call.1']
    #allocation5 [shape = 's32[1]{0}', space=sflag, size = 0x4, scoped, tag = 'scoped memory for tpu_custom_call.1']
    #allocation6 [shape = 'u8[8192]{0}', space=vmem, size = 0x2000, scoped, tag = 'input window, operand 1, single buffered']
    #allocation7 [shape = 's32[1]{0}', space=sflag, size = 0x4, scoped, tag = 'scoped memory for tpu_custom_call.1']
    #allocation8 [shape = 'u8[8192]{0}', space=vmem, size = 0x2000, scoped, tag = 'input window, operand 3, single buffered']
    #allocation9 [shape = 'u8[8192]{0}', space=vmem, size = 0x2000, scoped, tag = 'output window, operand 0, single buffered']
    #allocation10 [shape = 'u8[8192]{0}', space=vmem, size = 0x2000, scoped, tag = 'output window, operand 1, single buffered']
    #allocation11 [shape = 's32[1]{0}', space=sflag, size = 0x4, scoped, tag = 'scoped memory for tpu_custom_call.1']
    %12 = vsyncpa [#allocation4], 0
    %13 = vsyncpa [#allocation7], 0
    %14 = vsyncpa [#allocation5], 0
    %15 = vsyncpa [#allocation11], 0
    // Predicated region
    $region2: #{tpu_custom_call.1} parent=1 // pred_check
      _
    $region3: #{tpu_custom_call.1} parent=1 // pred_check_branch
      %17 = sbr.rel (0) target = $region5
    $region4: #{tpu_custom_call.1} parent=1 // pred_region
      %s19 = ssub.s32 256, 256
      %20 = vsyncadd [#allocation4], %s19
      %s21 = sshll.u32 [#allocation3], 4
      %s22 = int_to_ptr.vmem [resolvable:$true] %s21
      %27 = dma.hbm_to_vmem [thread:$0]  %s0, 256, %s22, [#allocation4], 128, 128, 8
    $region5: #{tpu_custom_call.1} parent=1 // pred_fallthru
      _
    // Predicated region
    $region6: #{tpu_custom_call.1} parent=1 // pred_check
      _
    $region7: #{tpu_custom_call.1} parent=1 // pred_check_branch
      %29 = sbr.rel (0) target = $region9
    $region8: #{tpu_custom_call.1} parent=1 // pred_region
      %s31 = ssub.s32 256, 256
      %32 = vsyncadd [#allocation7], %s31
      %s33 = sshll.u32 [#allocation6], 4
      %s34 = int_to_ptr.vmem [resolvable:$true] %s33
      %39 = dma.hbm_to_vmem [thread:$0]  %s1, 256, %s34, [#allocation7], 64, 64, 4
    $region9: #{tpu_custom_call.1} parent=1 // pred_fallthru
      _
    // Predicated region
    $region10: #{tpu_custom_call.1} parent=1 // pred_check
      _
    $region11: #{tpu_custom_call.1} parent=1 // pred_check_branch
      %41 = sbr.rel (0) target = $region13
    $region12: #{tpu_custom_call.1} parent=1 // pred_region
      _
    $region13: #{tpu_custom_call.1} parent=1 // pred_fallthru
      _
    // Predicated region
    $region14: #{tpu_custom_call.1} parent=1 // pred_check
      _
    $region15: #{tpu_custom_call.1} parent=1 // pred_check_branch
      %43 = sbr.rel (0) target = $region17
    $region16: #{tpu_custom_call.1} parent=1 // pred_region
      %s45 = ssub.s32 256, 256
      %46 = vsyncadd [#allocation7], %s45
      %s47 = sshll.u32 [#allocation8], 4
      %s48 = int_to_ptr.vmem [resolvable:$true] %s47
      %53 = dma.hbm_to_vmem [thread:$0]  %s3, 256, %s48, [#allocation7], 64, 64, 4
    $region17: #{tpu_custom_call.1} parent=1 // pred_fallthru
      _
    // Predicated region
    $region18: #{tpu_custom_call.1} parent=1 // pred_check
      _
    $region19: #{tpu_custom_call.1} parent=1 // pred_check_branch
      %55 = sbr.rel (0) target = $region21
    $region20: #{tpu_custom_call.1} parent=1 // pred_region
      _
    $region21: #{tpu_custom_call.1} parent=1 // pred_fallthru
      _
    // Predicated region
    $region22: #{tpu_custom_call.1} parent=1 // pred_check
      _
    $region23: #{tpu_custom_call.1} parent=1 // pred_check_branch
      %57 = sbr.rel (0) target = $region25
    $region24: #{tpu_custom_call.1} parent=1 // pred_region
      %58 = dma.done [#allocation4], 256
    $region25: #{tpu_custom_call.1} parent=1 // pred_fallthru
      _
    // Predicated region
    $region26: #{tpu_custom_call.1} parent=1 // pred_check
      _
    $region27: #{tpu_custom_call.1} parent=1 // pred_check_branch
      %60 = sbr.rel (0) target = $region29
    $region28: #{tpu_custom_call.1} parent=1 // pred_region
      %61 = dma.done [#allocation7], 256
    $region29: #{tpu_custom_call.1} parent=1 // pred_fallthru
      _
    // Predicated region
    $region30: #{tpu_custom_call.1} parent=1 // pred_check
      _
    $region31: #{tpu_custom_call.1} parent=1 // pred_check_branch
      %63 = sbr.rel (0) target = $region33
    $region32: #{tpu_custom_call.1} parent=1 // pred_region
      %64 = dma.done [#allocation7], 256
    $region33: #{tpu_custom_call.1} parent=1 // pred_fallthru
      _
    %p66 = scmp.eq.s32.totalorder 0, 0
    // Predicated region
    $region34: #{tpu_custom_call.1} parent=1 // pred_check
      %p67 = pneg %p66
    $region35: #{tpu_custom_call.1} parent=1 // pred_check_branch
      %69 = sbr.rel (%p67) target = $region37
    $region36: #{tpu_custom_call.1} parent=1 // pred_region
      %v70 = vld [vmem:[#allocation3] sm:$0xff]
      %v71 = vld [vmem:[#allocation3 + $0x8] sm:$0xff]
      %vm72 = vcmask 261120
      %v73 = vsel %vm72, %v70, 0.0
      %74 = vadd.xlane.f32.xlu0 %v73
      %v75 = vpop.xlane.xlu0 %74
      %v76 = vsel %vm72, %v71, 0.0
      %77 = vadd.xlane.f32.xlu0 %v76
      %v78 = vpop.xlane.xlu0 %77
      %v79 = vrcp.pop 32.0
      %v80 = vmul.f32 %v75, %v79
      %v81 = vmul.f32 %v78, %v79
      %v82 = vsub.f32 %v70, %v80
      %v83 = vsub.f32 %v71, %v81
      %v84 = vmul.f32 %v82, %v82
      %v85 = vmul.f32 %v83, %v83
      %v86 = vsel %vm72, %v84, 0.0
      %87 = vadd.xlane.f32.xlu0 %v86
      %v88 = vpop.xlane.xlu0 %87
      %v89 = vsel %vm72, %v85, 0.0
      %90 = vadd.xlane.f32.xlu0 %v89
      %v91 = vpop.xlane.xlu0 %90
      %v92 = vmul.f32 %v88, %v79
      %v93 = vmul.f32 %v91, %v79
      %v94 = vadd.f32 %v92, 1e-05
      %v95 = vadd.f32 %v93, 1e-05
      %v96 = vrsqrt.pop %v94
      %v97 = vrsqrt.pop %v95
      %v98 = vmul.f32 %v82, %v96
      %v99 = vmul.f32 %v83, %v97
      %v100 = vpack.c.bf16 %v99, %v98
      %v102 = vunpack.c.l.b16 %v100
      %v103 = vunpack.c.h.b16 %v100
      %v104 = vpack.c.b16 %v102, %v102
      %v105 = vpack.c.b16 %v103, %v103
      %vm108 = vcmask 257024
      %109 = vst.msk [vmem:[#allocation2] sm:$0xf] %vm108, %v104
      %110 = vst.msk [vmem:[#allocation2 + $0x4] sm:$0xf] %vm108, %v105
      %v111 = vld [vmem:[#allocation2] sm:$0xf]
      %v112 = vld [vmem:[#allocation2 + $0x4] sm:$0xf]
      %v113 = vld [vmem:[#allocation8] sm:$0xf]
      %v114 = vld [vmem:[#allocation8 + $0x4] sm:$0xf]
      %v115 = vld [vmem:[#allocation8 + $0x8] sm:$0xf]
      %v116 = vld [vmem:[#allocation8 + $0xc] sm:$0xf]
      %v117 = vld [vmem:[%s4] sm:$0x1]
      %v119 = vlaneseq
      %v120 = vshrl.u32 %v119, 7
      %v121 = vsub.s32 0, %v120
      %v122 = vrot.slane %v117, %v121
      %v126 = vunpack.c.l.b16 %v111
      %v127 = vunpack.c.l.b16 %v112
      %v128 = vpack.c.b16 %v127, %v126
      %v133 = vunpack.c.l.b16 %v113
      %v134 = vunpack.c.l.b16 %v114
      %v135 = vunpack.c.l.b16 %v115
      %v136 = vunpack.c.l.b16 %v116
      %v137 = vpack.c.b16 %v134, %v133
      %v138 = vpack.c.b16 %v136, %v135
      %v142 = vsel %vm72, %v128, 0
      %144 = vmatprep.subr.bf16.mxu0 0
      %145 = vmatpush1.bf16.msra.mxu0 0
      %146 = vmatprep.subr.bf16.mxu0 0
      %147 = vmatpush1.bf16.msra.mxu0 0
      %148 = vmatprep.subr.bf16.mxu0 0
      %149 = vmatpush1.bf16.msra.mxu0 0
      %150 = vmatprep.subr.bf16.mxu0 0
      %151 = vmatpush1.bf16.msra.mxu0 0
      %152 = vmatprep.subr.bf16.mxu0 0
      %153 = vmatpush1.bf16.msra.mxu0 0
      %154 = vmatprep.subr.bf16.mxu0 0
      %155 = vmatpush1.bf16.msra.mxu0 0
      %156 = vmatprep.subr.bf16.mxu0 0
      %157 = vmatpush1.bf16.msra.mxu0 %v138
      %158 = vmatprep.subr.bf16.mxu0 0
      %159 = vmatpush1.bf16.msra.mxu0 %v137
      %160 = vmatprep.subr.bf16.mxu0 0
      %161 = vmatpush2.bf16.msra.mxu0 0
      %162 = vmatprep.subr.bf16.mxu0 0
      %163 = vmatpush2.bf16.msra.mxu0 0
      %164 = vmatprep.subr.bf16.mxu0 0
      %165 = vmatpush2.bf16.msra.mxu0 0
      %166 = vmatprep.subr.bf16.mxu0 0
      %167 = vmatpush2.bf16.msra.mxu0 0
      %168 = vmatprep.subr.bf16.mxu0 0
      %169 = vmatpush2.bf16.msra.mxu0 0
      %170 = vmatprep.subr.bf16.mxu0 0
      %171 = vmatpush2.bf16.msra.mxu0 0
      %172 = vmatprep.subr.bf16.mxu0 0
      %173 = vmatpush2.bf16.msra.mxu0 0
      %174 = vmatprep.subr.bf16.mxu0 0
      %175 = vmatpush2.bf16.msra.mxu0 0
      %176 = vmatprep.mubr.bf16.mxu0 0
      %177 = vmatmul.mubr.bf16.gmra.mxu0 %v142
      %v178 = vpop.f32.mrf.mxu0
      %v179 = vadd.f32 %v122, %v178
      %v180 = vpop.f32.mrf.mxu0
      %v181 = vpop.f32.mrf.mxu0
      %v182 = vadd.f32 %v122, %v181
      %v183 = vpop.f32.mrf.mxu0
      %184 = vdwg.mxu0
      %185 = vst.msk [vmem:[#allocation10] sm:$0xff] %vm72, %v179
      %186 = vst.msk [vmem:[#allocation10 + $0x8] sm:$0xff] %vm72, %v182
    $region37: #{tpu_custom_call.1} parent=1 // pred_fallthru
      _
    %v187 = vld [vmem:[#allocation2] sm:$0xf]
    %v188 = vld [vmem:[#allocation2 + $0x4] sm:$0xf]
    %v189 = vld [vmem:[#allocation6] sm:$0xf]
    %v190 = vld [vmem:[#allocation6 + $0x4] sm:$0xf]
    %v191 = vld [vmem:[#allocation6 + $0x8] sm:$0xf]
    %v192 = vld [vmem:[#allocation6 + $0xc] sm:$0xf]
    %v193 = vld [vmem:[%s2] sm:$0x1]
    %v195 = vlaneseq
    %v196 = vshrl.u32 %v195, 7
    %v197 = vsub.s32 0, %v196
    %v198 = vrot.slane %v193, %v197
    %v202 = vunpack.c.l.b16 %v187
    %v203 = vunpack.c.l.b16 %v188
    %v204 = vpack.c.b16 %v203, %v202
    %v209 = vunpack.c.l.b16 %v189
    %v210 = vunpack.c.l.b16 %v190
    %v211 = vunpack.c.l.b16 %v191
    %v212 = vunpack.c.l.b16 %v192
    %v213 = vpack.c.b16 %v210, %v209
    %v214 = vpack.c.b16 %v212, %v211
    %vm217 = vcmask 261120
    %v219 = vsel %vm217, %v204, 0
    %221 = vmatprep.subr.bf16.mxu0 0
    %222 = vmatpush1.bf16.msra.mxu0 0
    %223 = vmatprep.subr.bf16.mxu0 0
    %224 = vmatpush1.bf16.msra.mxu0 0
    %225 = vmatprep.subr.bf16.mxu0 0
    %226 = vmatpush1.bf16.msra.mxu0 0
    %227 = vmatprep.subr.bf16.mxu0 0
    %228 = vmatpush1.bf16.msra.mxu0 0
    %229 = vmatprep.subr.bf16.mxu0 0
    %230 = vmatpush1.bf16.msra.mxu0 0
    %231 = vmatprep.subr.bf16.mxu0 0
    %232 = vmatpush1.bf16.msra.mxu0 0
    %233 = vmatprep.subr.bf16.mxu0 0
    %234 = vmatpush1.bf16.msra.mxu0 %v214
    %235 = vmatprep.subr.bf16.mxu0 0
    %236 = vmatpush1.bf16.msra.mxu0 %v213
    %237 = vmatprep.subr.bf16.mxu0 0
    %238 = vmatpush2.bf16.msra.mxu0 0
    %239 = vmatprep.subr.bf16.mxu0 0
    %240 = vmatpush2.bf16.msra.mxu0 0
    %241 = vmatprep.subr.bf16.mxu0 0
    %242 = vmatpush2.bf16.msra.mxu0 0
    %243 = vmatprep.subr.bf16.mxu0 0
    %244 = vmatpush2.bf16.msra.mxu0 0
    %245 = vmatprep.subr.bf16.mxu0 0
    %246 = vmatpush2.bf16.msra.mxu0 0
    %247 = vmatprep.subr.bf16.mxu0 0
    %248 = vmatpush2.bf16.msra.mxu0 0
    %249 = vmatprep.subr.bf16.mxu0 0
    %250 = vmatpush2.bf16.msra.mxu0 0
    %251 = vmatprep.subr.bf16.mxu0 0
    %252 = vmatpush2.bf16.msra.mxu0 0
    %253 = vmatprep.mubr.bf16.mxu0 0
    %254 = vmatmul.mubr.bf16.gmra.mxu0 %v219
    %v255 = vpop.f32.mrf.mxu0
    %v256 = vadd.f32 %v198, %v255
    %v257 = vpop.f32.mrf.mxu0
    %v258 = vpop.f32.mrf.mxu0
    %v259 = vadd.f32 %v198, %v258
    %v260 = vpop.f32.mrf.mxu0
    %261 = vdwg.mxu0
    %262 = vst [vmem:[#allocation9] sm:$0xff] %v256
    %263 = vst [vmem:[#allocation9 + $0x8] sm:$0xff] %v259
    // Predicated region
    $region38: #{tpu_custom_call.1} parent=1 // pred_check
      _
    $region39: #{tpu_custom_call.1} parent=1 // pred_check_branch
      %265 = sbr.rel (0) target = $region41
    $region40: #{tpu_custom_call.1} parent=1 // pred_region
      %s267 = ssub.s32 256, 256
      %268 = vsyncadd [#allocation5], %s267
      %s269 = sshll.u32 [#allocation9], 4
      %s270 = int_to_ptr.vmem [resolvable:$true] %s269
      %275 = dma.vmem_to_hbm [thread:$0]  %s270, 256, %s5, [#allocation5], 128, 128, 8
    $region41: #{tpu_custom_call.1} parent=1 // pred_fallthru
      _
    // Predicated region
    $region42: #{tpu_custom_call.1} parent=1 // pred_check
      _
    $region43: #{tpu_custom_call.1} parent=1 // pred_check_branch
      %277 = sbr.rel (0) target = $region45
    $region44: #{tpu_custom_call.1} parent=1 // pred_region
      %s279 = ssub.s32 256, 256
      %280 = vsyncadd [#allocation11], %s279
      %s281 = sshll.u32 [#allocation10], 4
      %s282 = int_to_ptr.vmem [resolvable:$true] %s281
      %287 = dma.vmem_to_hbm [thread:$0]  %s282, 256, %s6, [#allocation11], 128, 128, 8
    $region45: #{tpu_custom_call.1} parent=1 // pred_fallthru
      _
    // Predicated region
    $region46: #{tpu_custom_call.1} parent=1 // pred_check
      _
    $region47: #{tpu_custom_call.1} parent=1 // pred_check_branch
      %289 = sbr.rel (0) target = $region49
    $region48: #{tpu_custom_call.1} parent=1 // pred_region
      %290 = dma.done [#allocation5], 256
    $region49: #{tpu_custom_call.1} parent=1 // pred_fallthru
      _
    // Predicated region
    $region50: #{tpu_custom_call.1} parent=1 // pred_check
      _
    $region51: #{tpu_custom_call.1} parent=1 // pred_check_branch
      %292 = sbr.rel (0) target = $region53
    $region52: #{tpu_custom_call.1} parent=1 // pred_region
      %293 = dma.done [#allocation11], 256
    $region53: #{tpu_custom_call.1} parent=1 // pred_fallthru
      _
    %294 = vsyncpa [#allocation4], 1
    %295 = vsyncpa [#allocation7], 1
    %296 = vsyncpa [#allocation5], 1
    %297 = vsyncpa [#allocation11], 1

</llo_original>
